<compile_context>
chip_gen: v6e
topology: v6e:2x2x1
jax: 0.10.0
libtpu: 0.0.40
codegen_flags: <defaults>
</compile_context>

<pallas_src>
import jax
import jax.numpy as jnp
from jax import lax
from jax.experimental import pallas as pl
from jax.experimental.pallas import tpu as pltpu

BN_EPS = 1e-5
MATMUL_DTYPE = jnp.bfloat16   # matmul operand dtype; accumulation is always f32


def _ceil_to(x, m):
    return ((x + m - 1) // m) * m


# ----------------------------- weight preparation -----------------------------

def _fold_bn(w, b, gamma, beta, mean, var, eps=BN_EPS):
    """Fold eval-mode BatchNorm (+conv bias) into conv weights / bias."""
    scale = gamma * lax.rsqrt(var + eps)                     # (Cout,)
    w_f = w * scale[None, None, None, :]
    b_f = (b - mean) * scale + beta
    return w_f.astype(jnp.float32), b_f.astype(jnp.float32)


def _toeplitz(w, pad, w_in, w_out):
    """Block-Toeplitz matrices turning a stride-1 conv into KH matmuls.

    w: (KH, KW, Cin, Cout).  Returns T of shape (KH, w_in*Cin, w_out*Cout) with
    T[dh, wi*Cin+ci, wo*Cout+co] = w[dh, wi-wo+pad, ci, co] (zero outside the
    kernel support) -- width padding is encoded in the matrix itself.
    """
    kh, kw, cin, cout = w.shape
    wi = jnp.arange(w_in)
    wo = jnp.arange(w_out)
    dw = wi[:, None] - wo[None, :] + pad                     # (w_in, w_out)
    valid = (dw >= 0) & (dw < kw)
    dw_c = jnp.clip(dw, 0, kw - 1)
    t = w[:, dw_c, :, :]                                     # (KH, w_in, w_out, Cin, Cout)
    t = t * valid[None, :, :, None, None].astype(w.dtype)
    t = jnp.transpose(t, (0, 1, 3, 2, 4))                    # (KH, w_in, Cin, w_out, Cout)
    return t.reshape(kh, w_in * cin, w_out * cout)


def prepare_resnet_block(params, h, w, matmul_dtype=MATMUL_DTYPE):
    """One-time parameter prep (hoisted out of the forward pass)."""
    taps, pads, h_outs, lanes_list = [], [], [], []
    t_list, b_list = [], []

    cin0 = params["conv_block"][0][0].shape[2]
    h_in, w_in, c_in = h, w, cin0
    k_prev_pad = w * cin0                                    # K of the first layer (input lanes)

    for li, (lp, (stride, pad)) in enumerate(
            zip(params["conv_block"], params["conv_block_cfg"])):
        # TODO(synk): stride>1 / groups>1 / dilation>1 conv_block variants are
        # not generalized in this fused kernel (not used by this config).
        assert stride == 1
        wf, bf = _fold_bn(*lp)
        kh, kw, ci, co = wf.shape
        assert ci == c_in
        assert pad <= 16, "TODO(synk): generalize pad > 16 (scratch pad depth)"
        h_out = h_in + 2 * pad - kh + 1
        w_out = w_in + 2 * pad - kw + 1

        lanes = w_out * co
        lanes_pad = _ceil_to(max(lanes, 128), 128)           # lane-dense guard
        t = _toeplitz(wf, pad, w_in, w_out)                  # (kh, w_in*ci, lanes)
        k_rows = w_in * ci if li == 0 else k_prev_pad
        tp = jnp.zeros((kh, k_rows, lanes_pad), jnp.float32)
        tp = tp.at[:, :w_in * ci, :lanes].set(t)
        bvec = jnp.zeros((1, lanes_pad), jnp.float32)
        bvec = bvec.at[0, :lanes].set(jnp.tile(bf, (w_out,)))

        t_list.append(tp.astype(matmul_dtype))
        b_list.append(bvec)                                  # biases stay f32
        taps.append(kh)
        pads.append(pad)
        h_outs.append(h_out)
        lanes_list.append(lanes_pad)
        h_in, w_in, c_in = h_out, w_out, co
        k_prev_pad = lanes_pad

    # shortcut: 1x1 conv, stride 1, padding 0 (shortcut_stride=1 in the module)
    wf_sc, bf_sc = _fold_bn(*params["shortcut"])
    assert wf_sc.shape[0] == 1 and wf_sc.shape[1] == 1 and wf_sc.shape[2] == cin0
    c_sc = wf_sc.shape[3]
    lanes_sc = w * c_sc
    assert h_outs[-1] == h and w_in == w and c_in == c_sc, "main/shortcut shape mismatch"

    lanes_out_pad = lanes_list[-1]
    t_sc_raw = _toeplitz(wf_sc, 0, w, w)[0]                  # (w*cin0, lanes_sc)
    t_sc = jnp.zeros((w * cin0, lanes_out_pad), jnp.float32)
    t_sc = t_sc.at[:, :lanes_sc].set(t_sc_raw).astype(matmul_dtype)
    b_sc = jnp.zeros((1, lanes_out_pad), jnp.float32)
    b_sc = b_sc.at[0, :lanes_sc].set(jnp.tile(bf_sc, (w,)))

    return {
        "taps": tuple(taps), "pads": tuple(pads), "h_outs": tuple(h_outs),
        "lanes_list": tuple(lanes_list), "lanes_out_pad": lanes_out_pad,
        "t_list": t_list, "b_list": b_list, "t_sc": t_sc, "b_sc": b_sc,
        "h": h, "w": w, "cin": cin0, "c_sc": c_sc, "lanes_sc": lanes_sc,
        "hp0": h + 2 * pads[0], "mm_dtype": matmul_dtype,
    }


# --------------------------------- the kernel ---------------------------------

def _build_fused_kernel(prep, b_blk):
    taps, pads, h_outs = prep["taps"], prep["pads"], prep["h_outs"]
    h0 = prep["h"]
    mm_dtype = prep["mm_dtype"]
    n_layers = len(taps)

    def kernel(*refs):
        x_ref = refs[0]                                      # (B, hp0, W*Cin)
        tb = refs[1:1 + 2 * n_layers]                        # (toeplitz_i, bias_i) pairs
        tsc_ref = refs[1 + 2 * n_layers]                     # (W*Cin, Lout)
        bsc_ref = refs[2 + 2 * n_layers]                     # (1, Lout)
        o_ref = refs[3 + 2 * n_layers]                       # (B, H, Lout)
        scratch = refs[4 + 2 * n_layers:]                    # per-handoff VMEM buffers

        k0 = x_ref.shape[-1]

        # ---- main path, layer 0: taps read from the height-padded input block ----
        t0, b0 = tb[0], tb[1]
        h_out = h_outs[0]
        acc = None
        for dh in range(taps[0]):                            # KH matmuls, M = B*h_out
            lhs = x_ref[:, pl.ds(dh, h_out), :].reshape(b_blk * h_out, k0)
            part = jnp.dot(lhs, t0[dh], preferred_element_type=jnp.float32)
            acc = part if acc is None else acc + part
        hval = jnp.maximum(acc + b0[...], 0.0)               # (B*h_out, L0) f32

        # ---- main path, layers 1..: handoff via aligned-store VMEM scratch ----
        for i in range(1, n_layers):
            t_i, b_i = tb[2 * i], tb[2 * i + 1]
            p = pads[i]
            h_prev = h_outs[i - 1]
            h_out = h_outs[i]
            scr = scratch[i - 1]                             # (B, h_prev + 32, L_prev)
            l_prev = scr.shape[-1]

            # All stores start at sublane offsets 0 / 16 / 16+h_prev: no masked
            # or misaligned stores.  Zero pads are rewritten every step (safe
            # under the "parallel" grid dimension on v7x megacore).
            zpad = jnp.zeros((b_blk, 16, l_prev), scr.dtype)
            scr[:, pl.ds(0, 16), :] = zpad
            scr[:, pl.ds(16 + h_prev, 16), :] = zpad
            scr[:, pl.ds(16, h_prev), :] = (
                hval.astype(scr.dtype).reshape(b_blk, h_prev, l_prev))

            acc = None
            for dh in range(taps[i]):
                s = dh - p                                   # vertical tap shift
                lhs = scr[:, pl.ds(16 + s, h_out), :].reshape(b_blk * h_out, l_prev)
                part = jnp.dot(lhs, t_i[dh], preferred_element_type=jnp.float32)
                acc = part if acc is None else acc + part
            hval = jnp.maximum(acc + b_i[...], 0.0)          # (B*h_out, L_i) f32

        # ---- shortcut: 1x1 conv -> BN -> ReLU on the unpadded input rows ----
        p0 = pads[0]
        xs = x_ref[:, pl.ds(p0, h0), :].reshape(b_blk * h0, k0)
        sc = jnp.dot(xs, tsc_ref[...], preferred_element_type=jnp.float32)
        sc = jnp.maximum(sc + bsc_ref[...], 0.0)

        # ---- F.relu(conv_block(x) + shortcut(x)): one lane-dense aligned store ----
        out = jnp.maximum(hval + sc, 0.0)
        o_ref[...] = out.reshape(b_blk, h0, out.shape[-1]).astype(o_ref.dtype)

    return kernel


# --------------------------------- the wrapper --------------------------------

def resnet_block_forward(x_nchw, prep, batch_block=8):
    """PyTorch-convention NCHW in / NCHW out, using prepared weights."""
    x = jnp.transpose(x_nchw, (0, 2, 3, 1)).astype(jnp.float32)   # -> NHWC
    n, h, w, cin = x.shape
    assert (h, w, cin) == (prep["h"], prep["w"], prep["cin"])

    mm_dtype = prep["mm_dtype"]
    p0 = prep["pads"][0]
    hp0 = prep["hp0"]
    k0 = w * cin
    lanes_out = prep["lanes_out_pad"]
    taps = prep["taps"]

    # height-pad the input exactly once (width padding lives in the Toeplitz weights)
    x2d = x.reshape(n, h, k0)
    if p0 > 0:
        x2d = jnp.pad(x2d, ((0, 0), (p0, p0), (0, 0)))
    x2d = x2d.astype(mm_dtype)

    # batch blocking: several images per grid step (bigger DMAs, bigger MXU M).
    # Note for v7x megacore: pick batch_block <= N/2 when N allows, so the grid
    # has >= 2 steps and both TensorCores get work.
    b_blk = max(1, min(batch_block, n))
    n_pad = _ceil_to(n, b_blk)
    if n_pad != n:
        x2d = jnp.pad(x2d, ((0, n_pad - n), (0, 0), (0, 0)))

    kernel = _build_fused_kernel(prep, b_blk)

    in_specs = [pl.BlockSpec((b_blk, hp0, k0), lambda g: (g, 0, 0))]
    inputs = [x2d]
    for t, bvec in zip(prep["t_list"], prep["b_list"]):
        in_specs.append(pl.BlockSpec(t.shape, lambda g: (0, 0, 0)))
        in_specs.append(pl.BlockSpec(bvec.shape, lambda g: (0, 0)))
        inputs += [t, bvec]
    in_specs.append(pl.BlockSpec(prep["t_sc"].shape, lambda g: (0, 0)))
    in_specs.append(pl.BlockSpec(prep["b_sc"].shape, lambda g: (0, 0)))
    inputs += [prep["t_sc"], prep["b_sc"]]

    # one VMEM scratch per inter-layer handoff: 16 aligned zero rows above and
    # below the h_prev valid rows (supports any pad <= 16 with aligned stores)
    scratch_shapes = [
        pltpu.VMEM((b_blk, prep["h_outs"][i - 1] + 32, prep["lanes_list"][i - 1]),
                   mm_dtype)
        for i in range(1, len(taps))
    ]

    out = pl.pallas_call(
        kernel,
        out_shape=jax.ShapeDtypeStruct((n_pad, h, lanes_out), jnp.float32),
        grid_spec=pltpu.PrefetchScalarGridSpec(
            num_scalar_prefetch=0,
            grid=(n_pad // b_blk,),
            in_specs=in_specs,
            out_specs=pl.BlockSpec((b_blk, h, lanes_out), lambda g: (g, 0, 0)),
            scratch_shapes=scratch_shapes,
        ),
        compiler_params=pltpu.CompilerParams(
            dimension_semantics=("parallel",),        # v7x: grid split over both TCs
            vmem_limit_bytes=48 * 1024 * 1024,        # explicit; v7x has 64 MiB physical
        ),
    )(*inputs)

    out = out[:n, :, :prep["lanes_sc"]].reshape(n, h, w, prep["c_sc"])
    return jnp.transpose(out, (0, 3, 1, 2))          # back to NCHW


# ----------------------- deterministic parameter setup -----------------------

def _init_conv_bn(key, cin, cout, kh, kw):
    kw_key, kb_key, km_key, kv_key, kg_key, kbeta_key = jax.random.split(key, 6)
    w = jax.random.normal(kw_key, (kh, kw, cin, cout), jnp.float32) * 0.1
    b = jax.random.normal(kb_key, (cout,), jnp.float32) * 0.1
    gamma = 1.0 + 0.1 * jax.random.normal(kg_key, (cout,), jnp.float32)
    beta = 0.1 * jax.random.normal(kbeta_key, (cout,), jnp.float32)
    mean = 0.1 * jax.random.normal(km_key, (cout,), jnp.float32)
    var = jnp.abs(jax.random.normal(kv_key, (cout,), jnp.float32)) + 0.5
    return (w, b, gamma, beta, mean, var)


def make_params(key, cin, filters, kernel_sizes, strides, paddings):
    keys = jax.random.split(key, len(filters) + 1)
    conv_block_params, cfg = [], []
    c_prev = cin
    for i, (f, k, s, p) in enumerate(zip(filters, kernel_sizes, strides, paddings)):
        conv_block_params.append(_init_conv_bn(keys[i], c_prev, f, k, k))
        cfg.append((s, p))
        c_prev = f
    # shortcut: shortcut_stride=1 -> kernel_size=1, padding=0
    shortcut_params = _init_conv_bn(keys[-1], cin, filters[-1], 1, 1)
    return {"conv_block": conv_block_params,
            "conv_block_cfg": cfg,
            "shortcut": shortcut_params}


# ------------------------------ reference (JAX) -------------------------------

def _ref_conv_bn_relu(x, params, stride, padding):
    w, b, gamma, beta, mean, var = params
    y = lax.conv_general_dilated(
        x, w, window_strides=(stride, stride),
        padding=[(padding, padding), (padding, padding)],
        dimension_numbers=("NHWC", "HWIO", "NHWC"))
    y = y + b[None, None, None, :]
    y = (y - mean) * (gamma * lax.rsqrt(var + BN_EPS)) + beta
    return jnp.maximum(y, 0.0)


def resnet_block_ref(x_nchw, params):
    x = jnp.transpose(x_nchw, (0, 2, 3, 1)).astype(jnp.float32)
    hmain = x
    for lp, (s, p) in zip(params["conv_block"], params["conv_block_cfg"]):
        hmain = _ref_conv_bn_relu(hmain, lp, s, p)
    sc = _ref_conv_bn_relu(x, params["shortcut"], 1, 0)
    out = jnp.maximum(hmain + sc, 0.0)
    return jnp.transpose(out, (0, 3, 1, 2))


if __name__ == "__main__":
    key = jax.random.PRNGKey(0)
    k_x, k_p = jax.random.split(key)

    # Resnet_Block(input=4, filters=[8, 8], kernel_sizes=[3, 3],
    #              stride=[1, 1], padding=[1, 1], shortcut_stride=1)
    N, C, H, W = 2, 4, 16, 16
    x = jax.random.normal(k_x, (N, C, H, W), jnp.float32)   # NCHW like PyTorch
    params = make_params(k_p, cin=C, filters=[8, 8], kernel_sizes=[3, 3],
                         strides=[1, 1], paddings=[1, 1])

    prep = prepare_resnet_block(params, H, W)               # one-time weight prep (hoisted)
    fwd = jax.jit(lambda xx: resnet_block_forward(xx, prep))

    out = jax.block_until_ready(fwd(x))

    ref = resnet_block_ref(x, params)
    assert out.shape == (N, 8, H, W), out.shape
    err = jnp.abs(out - ref)
    max_err = float(jnp.max(err))
    mean_err = float(jnp.mean(err))
    # bf16 matmul operands (f32 accumulation) vs. the pure-f32 reference:
    # loosened tolerance (set MATMUL_DTYPE=float32 to recover ~1e-4 agreement).
    assert max_err < 1.2e-1 and mean_err < 1.5e-2, (max_err, mean_err)

    print("KERNEL_OK")
</pallas_src>

<mosaic_0001>
module attributes {stable_mosaic.version = 11 : i64} {
  func.func @kernel(%arg0: i32, %arg1: memref<2x18x64xbf16, #tpu.memory_space<vmem>>, %arg2: memref<3x64x128xbf16, #tpu.memory_space<vmem>>, %arg3: memref<1x128xf32, #tpu.memory_space<vmem>>, %arg4: memref<3x128x128xbf16, #tpu.memory_space<vmem>>, %arg5: memref<1x128xf32, #tpu.memory_space<vmem>>, %arg6: memref<64x128xbf16, #tpu.memory_space<vmem>>, %arg7: memref<1x128xf32, #tpu.memory_space<vmem>>, %arg8: memref<2x16x128xf32, #tpu.memory_space<vmem>>, %arg9: memref<2x48x128xbf16, #tpu.memory_space<vmem>>) attributes {dimension_semantics = [#tpu.dimension_semantics<parallel>], iteration_bounds = array<i64: 1>, scalar_prefetch = 0 : i64, scratch_operands = 1 : i64, tpu.core_type = #tpu.core_type<tc>, window_params = [{transform_indices = @transform_0, window_bounds = array<i64: 2, 18, 64>}, {pipeline_mode = #tpu.pipeline_mode<synchronous>, transform_indices = @transform_1, window_bounds = array<i64: 3, 64, 128>}, {pipeline_mode = #tpu.pipeline_mode<synchronous>, transform_indices = @transform_2, window_bounds = array<i64: 1, 128>}, {pipeline_mode = #tpu.pipeline_mode<synchronous>, transform_indices = @transform_3, window_bounds = array<i64: 3, 128, 128>}, {pipeline_mode = #tpu.pipeline_mode<synchronous>, transform_indices = @transform_4, window_bounds = array<i64: 1, 128>}, {pipeline_mode = #tpu.pipeline_mode<synchronous>, transform_indices = @transform_5, window_bounds = array<i64: 64, 128>}, {pipeline_mode = #tpu.pipeline_mode<synchronous>, transform_indices = @transform_6, window_bounds = array<i64: 1, 128>}, {transform_indices = @transform_7, window_bounds = array<i64: 2, 16, 128>}]} {
    %c0 = arith.constant 0 : index
    %c0_0 = arith.constant 0 : index
    %c0_1 = arith.constant 0 : index
    %0 = vector.load %arg1[%c0, %c0_0, %c0_1] : memref<2x18x64xbf16, #tpu.memory_space<vmem>>, vector<2x16x64xbf16>
    %1 = vector.shape_cast %0 : vector<2x16x64xbf16> to vector<32x64xbf16>
    %c0_2 = arith.constant 0 : index
    %c0_3 = arith.constant 0 : index
    %c0_4 = arith.constant 0 : index
    %2 = vector.load %arg2[%c0_2, %c0_3, %c0_4] : memref<3x64x128xbf16, #tpu.memory_space<vmem>>, vector<1x64x128xbf16>
    %3 = vector.shape_cast %2 : vector<1x64x128xbf16> to vector<64x128xbf16>
    %cst = arith.constant dense<0.000000e+00> : vector<32x128xf32>
    %4 = tpu.matmul %1, %3, %cst {dimension_numbers = #tpu.dot_dimension_numbers<[1], [0], [0], [1], [0, 0, 1, 1], [], []>} : vector<32x64xbf16>, vector<64x128xbf16>, vector<32x128xf32> -> vector<32x128xf32>
    %c0_5 = arith.constant 0 : index
    %c1 = arith.constant 1 : index
    %c0_6 = arith.constant 0 : index
    %5 = vector.load %arg1[%c0_5, %c1, %c0_6] : memref<2x18x64xbf16, #tpu.memory_space<vmem>>, vector<2x16x64xbf16>
    %6 = vector.shape_cast %5 : vector<2x16x64xbf16> to vector<32x64xbf16>
    %c1_7 = arith.constant 1 : index
    %c0_8 = arith.constant 0 : index
    %c0_9 = arith.constant 0 : index
    %7 = vector.load %arg2[%c1_7, %c0_8, %c0_9] : memref<3x64x128xbf16, #tpu.memory_space<vmem>>, vector<1x64x128xbf16>
    %8 = vector.shape_cast %7 : vector<1x64x128xbf16> to vector<64x128xbf16>
    %cst_10 = arith.constant dense<0.000000e+00> : vector<32x128xf32>
    %9 = tpu.matmul %6, %8, %cst_10 {dimension_numbers = #tpu.dot_dimension_numbers<[1], [0], [0], [1], [0, 0, 1, 1], [], []>} : vector<32x64xbf16>, vector<64x128xbf16>, vector<32x128xf32> -> vector<32x128xf32>
    %10 = arith.addf %4, %9 : vector<32x128xf32>
    %c0_11 = arith.constant 0 : index
    %c2 = arith.constant 2 : index
    %c0_12 = arith.constant 0 : index
    %11 = vector.load %arg1[%c0_11, %c2, %c0_12] : memref<2x18x64xbf16, #tpu.memory_space<vmem>>, vector<2x16x64xbf16>
    %12 = vector.shape_cast %11 : vector<2x16x64xbf16> to vector<32x64xbf16>
    %c2_13 = arith.constant 2 : index
    %c0_14 = arith.constant 0 : index
    %c0_15 = arith.constant 0 : index
    %13 = vector.load %arg2[%c2_13, %c0_14, %c0_15] : memref<3x64x128xbf16, #tpu.memory_space<vmem>>, vector<1x64x128xbf16>
    %14 = vector.shape_cast %13 : vector<1x64x128xbf16> to vector<64x128xbf16>
    %cst_16 = arith.constant dense<0.000000e+00> : vector<32x128xf32>
    %15 = tpu.matmul %12, %14, %cst_16 {dimension_numbers = #tpu.dot_dimension_numbers<[1], [0], [0], [1], [0, 0, 1, 1], [], []>} : vector<32x64xbf16>, vector<64x128xbf16>, vector<32x128xf32> -> vector<32x128xf32>
    %16 = arith.addf %10, %15 : vector<32x128xf32>
    %c0_17 = arith.constant 0 : index
    %c0_18 = arith.constant 0 : index
    %17 = vector.load %arg3[%c0_17, %c0_18] : memref<1x128xf32, #tpu.memory_space<vmem>>, vector<1x128xf32>
    %18 = vector.broadcast %17 : vector<1x128xf32> to vector<32x128xf32>
    %19 = arith.addf %16, %18 : vector<32x128xf32>
    %cst_19 = arith.constant 0.000000e+00 : f32
    %20 = vector.broadcast %cst_19 : f32 to vector<32x128xf32>
    %21 = arith.maximumf %19, %20 : vector<32x128xf32>
    %cst_20 = arith.constant 0.000000e+00 : bf16
    %22 = vector.broadcast %cst_20 : bf16 to vector<2x16x128xbf16>
    %c0_21 = arith.constant 0 : index
    %c0_22 = arith.constant 0 : index
    %c0_23 = arith.constant 0 : index
    %23 = vector.load %arg9[%c0_21, %c0_22, %c0_23] : memref<2x48x128xbf16, #tpu.memory_space<vmem>>, vector<2x16x128xbf16>
    tpu.vector_store %arg9[%c0_21, %c0_22, %c0_23], %22 {strides = array<i32>} : memref<2x48x128xbf16, #tpu.memory_space<vmem>>, vector<2x16x128xbf16>,
    %c0_24 = arith.constant 0 : index
    %c32 = arith.constant 32 : index
    %c0_25 = arith.constant 0 : index
    %24 = vector.load %arg9[%c0_24, %c32, %c0_25] : memref<2x48x128xbf16, #tpu.memory_space<vmem>>, vector<2x16x128xbf16>
    tpu.vector_store %arg9[%c0_24, %c32, %c0_25], %22 {strides = array<i32>} : memref<2x48x128xbf16, #tpu.memory_space<vmem>>, vector<2x16x128xbf16>,
    %25 = arith.truncf %21 : vector<32x128xf32> to vector<32x128xbf16>
    %26 = vector.shape_cast %25 : vector<32x128xbf16> to vector<2x16x128xbf16>
    %c0_26 = arith.constant 0 : index
    %c16 = arith.constant 16 : index
    %c0_27 = arith.constant 0 : index
    %27 = vector.load %arg9[%c0_26, %c16, %c0_27] : memref<2x48x128xbf16, #tpu.memory_space<vmem>>, vector<2x16x128xbf16>
    tpu.vector_store %arg9[%c0_26, %c16, %c0_27], %26 {strides = array<i32>} : memref<2x48x128xbf16, #tpu.memory_space<vmem>>, vector<2x16x128xbf16>,
    %c0_28 = arith.constant 0 : index
    %c15 = arith.constant 15 : index
    %c0_29 = arith.constant 0 : index
    %28 = vector.load %arg9[%c0_28, %c15, %c0_29] : memref<2x48x128xbf16, #tpu.memory_space<vmem>>, vector<2x16x128xbf16>
    %29 = vector.shape_cast %28 : vector<2x16x128xbf16> to vector<32x128xbf16>
    %c0_30 = arith.constant 0 : index
    %c0_31 = arith.constant 0 : index
    %c0_32 = arith.constant 0 : index
    %30 = vector.load %arg4[%c0_30, %c0_31, %c0_32] : memref<3x128x128xbf16, #tpu.memory_space<vmem>>, vector<1x128x128xbf16>
    %31 = vector.shape_cast %30 : vector<1x128x128xbf16> to vector<128x128xbf16>
    %cst_33 = arith.constant dense<0.000000e+00> : vector<32x128xf32>
    %32 = tpu.matmul %29, %31, %cst_33 {dimension_numbers = #tpu.dot_dimension_numbers<[1], [0], [0], [1], [0, 0, 1, 1], [], []>} : vector<32x128xbf16>, vector<128x128xbf16>, vector<32x128xf32> -> vector<32x128xf32>
    %c0_34 = arith.constant 0 : index
    %c16_35 = arith.constant 16 : index
    %c0_36 = arith.constant 0 : index
    %33 = vector.load %arg9[%c0_34, %c16_35, %c0_36] : memref<2x48x128xbf16, #tpu.memory_space<vmem>>, vector<2x16x128xbf16>
    %34 = vector.shape_cast %33 : vector<2x16x128xbf16> to vector<32x128xbf16>
    %c1_37 = arith.constant 1 : index
    %c0_38 = arith.constant 0 : index
    %c0_39 = arith.constant 0 : index
    %35 = vector.load %arg4[%c1_37, %c0_38, %c0_39] : memref<3x128x128xbf16, #tpu.memory_space<vmem>>, vector<1x128x128xbf16>
    %36 = vector.shape_cast %35 : vector<1x128x128xbf16> to vector<128x128xbf16>
    %cst_40 = arith.constant dense<0.000000e+00> : vector<32x128xf32>
    %37 = tpu.matmul %34, %36, %cst_40 {dimension_numbers = #tpu.dot_dimension_numbers<[1], [0], [0], [1], [0, 0, 1, 1], [], []>} : vector<32x128xbf16>, vector<128x128xbf16>, vector<32x128xf32> -> vector<32x128xf32>
    %38 = arith.addf %32, %37 : vector<32x128xf32>
    %c0_41 = arith.constant 0 : index
    %c17 = arith.constant 17 : index
    %c0_42 = arith.constant 0 : index
    %39 = vector.load %arg9[%c0_41, %c17, %c0_42] : memref<2x48x128xbf16, #tpu.memory_space<vmem>>, vector<2x16x128xbf16>
    %40 = vector.shape_cast %39 : vector<2x16x128xbf16> to vector<32x128xbf16>
    %c2_43 = arith.constant 2 : index
    %c0_44 = arith.constant 0 : index
    %c0_45 = arith.constant 0 : index
    %41 = vector.load %arg4[%c2_43, %c0_44, %c0_45] : memref<3x128x128xbf16, #tpu.memory_space<vmem>>, vector<1x128x128xbf16>
    %42 = vector.shape_cast %41 : vector<1x128x128xbf16> to vector<128x128xbf16>
    %cst_46 = arith.constant dense<0.000000e+00> : vector<32x128xf32>
    %43 = tpu.matmul %40, %42, %cst_46 {dimension_numbers = #tpu.dot_dimension_numbers<[1], [0], [0], [1], [0, 0, 1, 1], [], []>} : vector<32x128xbf16>, vector<128x128xbf16>, vector<32x128xf32> -> vector<32x128xf32>
    %44 = arith.addf %38, %43 : vector<32x128xf32>
    %c0_47 = arith.constant 0 : index
    %c0_48 = arith.constant 0 : index
    %45 = vector.load %arg5[%c0_47, %c0_48] : memref<1x128xf32, #tpu.memory_space<vmem>>, vector<1x128xf32>
    %46 = vector.broadcast %45 : vector<1x128xf32> to vector<32x128xf32>
    %47 = arith.addf %44, %46 : vector<32x128xf32>
    %cst_49 = arith.constant 0.000000e+00 : f32
    %48 = vector.broadcast %cst_49 : f32 to vector<32x128xf32>
    %49 = arith.maximumf %47, %48 : vector<32x128xf32>
    %c0_50 = arith.constant 0 : index
    %c1_51 = arith.constant 1 : index
    %c0_52 = arith.constant 0 : index
    %50 = vector.load %arg1[%c0_50, %c1_51, %c0_52] : memref<2x18x64xbf16, #tpu.memory_space<vmem>>, vector<2x16x64xbf16>
    %51 = vector.shape_cast %50 : vector<2x16x64xbf16> to vector<32x64xbf16>
    %c0_53 = arith.constant 0 : index
    %c0_54 = arith.constant 0 : index
    %52 = vector.load %arg6[%c0_53, %c0_54] : memref<64x128xbf16, #tpu.memory_space<vmem>>, vector<64x128xbf16>
    %cst_55 = arith.constant dense<0.000000e+00> : vector<32x128xf32>
    %53 = tpu.matmul %51, %52, %cst_55 {dimension_numbers = #tpu.dot_dimension_numbers<[1], [0], [0], [1], [0, 0, 1, 1], [], []>} : vector<32x64xbf16>, vector<64x128xbf16>, vector<32x128xf32> -> vector<32x128xf32>
    %c0_56 = arith.constant 0 : index
    %c0_57 = arith.constant 0 : index
    %54 = vector.load %arg7[%c0_56, %c0_57] : memref<1x128xf32, #tpu.memory_space<vmem>>, vector<1x128xf32>
    %55 = vector.broadcast %54 : vector<1x128xf32> to vector<32x128xf32>
    %56 = arith.addf %53, %55 : vector<32x128xf32>
    %cst_58 = arith.constant 0.000000e+00 : f32
    %57 = vector.broadcast %cst_58 : f32 to vector<32x128xf32>
    %58 = arith.maximumf %56, %57 : vector<32x128xf32>
    %59 = arith.addf %49, %58 : vector<32x128xf32>
    %cst_59 = arith.constant 0.000000e+00 : f32
    %60 = vector.broadcast %cst_59 : f32 to vector<32x128xf32>
    %61 = arith.maximumf %59, %60 : vector<32x128xf32>
    %62 = vector.shape_cast %61 : vector<32x128xf32> to vector<2x16x128xf32>
    %c0_60 = arith.constant 0 : index
    %c0_61 = arith.constant 0 : index
    %c0_62 = arith.constant 0 : index
    %63 = vector.load %arg8[%c0_60, %c0_61, %c0_62] : memref<2x16x128xf32, #tpu.memory_space<vmem>>, vector<2x16x128xf32>
    tpu.vector_store %arg8[%c0_60, %c0_61, %c0_62], %62 {strides = array<i32>} : memref<2x16x128xf32, #tpu.memory_space<vmem>>, vector<2x16x128xf32>,
    return
  }
  func.func @transform_0(%arg0: i32) -> (i32, i32, i32) {
    %c0_i32 = arith.constant 0 : i32
    %c0_i32_0 = arith.constant 0 : i32
    %c0_i32_1 = arith.constant 0 : i32
    return %arg0, %c0_i32, %c0_i32_0 : i32, i32, i32
  }
  func.func @transform_1(%arg0: i32) -> (i32, i32, i32) {
    %c0_i32 = arith.constant 0 : i32
    %c0_i32_0 = arith.constant 0 : i32
    %c0_i32_1 = arith.constant 0 : i32
    %c0_i32_2 = arith.constant 0 : i32
    return %c0_i32, %c0_i32_0, %c0_i32_1 : i32, i32, i32
  }
  func.func @transform_2(%arg0: i32) -> (i32, i32) {
    %c0_i32 = arith.constant 0 : i32
    %c0_i32_0 = arith.constant 0 : i32
    %c0_i32_1 = arith.constant 0 : i32
    return %c0_i32, %c0_i32_0 : i32, i32
  }
  func.func @transform_3(%arg0: i32) -> (i32, i32, i32) {
    %c0_i32 = arith.constant 0 : i32
    %c0_i32_0 = arith.constant 0 : i32
    %c0_i32_1 = arith.constant 0 : i32
    %c0_i32_2 = arith.constant 0 : i32
    return %c0_i32, %c0_i32_0, %c0_i32_1 : i32, i32, i32
  }
  func.func @transform_4(%arg0: i32) -> (i32, i32) {
    %c0_i32 = arith.constant 0 : i32
    %c0_i32_0 = arith.constant 0 : i32
    %c0_i32_1 = arith.constant 0 : i32
    return %c0_i32, %c0_i32_0 : i32, i32
  }
  func.func @transform_5(%arg0: i32) -> (i32, i32) {
    %c0_i32 = arith.constant 0 : i32
    %c0_i32_0 = arith.constant 0 : i32
    %c0_i32_1 = arith.constant 0 : i32
    return %c0_i32, %c0_i32_0 : i32, i32
  }
  func.func @transform_6(%arg0: i32) -> (i32, i32) {
    %c0_i32 = arith.constant 0 : i32
    %c0_i32_0 = arith.constant 0 : i32
    %c0_i32_1 = arith.constant 0 : i32
    return %c0_i32, %c0_i32_0 : i32, i32
  }
  func.func @transform_7(%arg0: i32) -> (i32, i32, i32) {
    %c0_i32 = arith.constant 0 : i32
    %c0_i32_0 = arith.constant 0 : i32
    %c0_i32_1 = arith.constant 0 : i32
    return %arg0, %c0_i32, %c0_i32_0 : i32, i32, i32
  }
}

</mosaic_0001>

<llo_original>
// kernel: _lambda_.1
$region0: #{_lambda_.1}
  #allocation0 [shape = 'u32[]', space=smem, size = 0x4, offset = 0x4, fixed_abs, tag = 'smem constant byte address 0x4 - core index']
  #allocation1 [shape = 'u32[144,128]{1,0:T(1,128)}', space=vmem, size = 0x12000, scoped, tag = 'internal scratch']
  #allocation2 [shape = 'bf16[2,48,128]{2,1,0:T(8,128)(2,1)}', space=vmem, size = 0x6000, scoped, tag = 'scratch operand']
  %s0 = inlined_call_operand.vmem [shape: bf16[2,18,64], index: 0, kind: input, shape index: {}]
  %s1 = inlined_call_operand.vmem [shape: bf16[3,64,128], index: 1, kind: input, shape index: {}]
  %s2 = inlined_call_operand.vmem [shape: f32[1,128], index: 2, kind: input, shape index: {}]
  %s3 = inlined_call_operand.vmem [shape: bf16[3,128,128], index: 3, kind: input, shape index: {}]
  %s4 = inlined_call_operand.vmem [shape: f32[1,128], index: 4, kind: input, shape index: {}]
  %s5 = inlined_call_operand.vmem [shape: bf16[64,128], index: 5, kind: input, shape index: {}]
  %s6 = inlined_call_operand.vmem [shape: f32[1,128], index: 6, kind: input, shape index: {}]
  %s7 = inlined_call_operand.vmem [shape: f32[2,16,128], index: 7, kind: output, shape index: {}]
  %s8 = sld [smem:[#allocation0]]
  $region38: #{_lambda_.1} parent=0
    _
  %s10 = ssub.s32 1, %s8
  %s11 = scalar_select 0, %s10, %s8
  // Predicated region
  $region2: #{_lambda_.1} parent=0 // pred_check
    _
  $region3: #{_lambda_.1} parent=0 // pred_check_branch
    %13 = sbr.rel (0) target = $region5
  $region4: #{_lambda_.1} parent=0 // pred_region
    _
  $region5: #{_lambda_.1} parent=0 // pred_fallthru
    _
  // Predicated region
  $region6: #{_lambda_.1} parent=0 // pred_check
    _
  $region7: #{_lambda_.1} parent=0 // pred_check_branch
    %15 = sbr.rel (0) target = $region9
  $region8: #{_lambda_.1} parent=0 // pred_region
    _
  $region9: #{_lambda_.1} parent=0 // pred_fallthru
    _
  // Predicated region
  $region10: #{_lambda_.1} parent=0 // pred_check
    _
  $region11: #{_lambda_.1} parent=0 // pred_check_branch
    %17 = sbr.rel (0) target = $region13
  $region12: #{_lambda_.1} parent=0 // pred_region
    _
  $region13: #{_lambda_.1} parent=0 // pred_fallthru
    _
  // Predicated region
  $region14: #{_lambda_.1} parent=0 // pred_check
    _
  $region15: #{_lambda_.1} parent=0 // pred_check_branch
    %19 = sbr.rel (0) target = $region17
  $region16: #{_lambda_.1} parent=0 // pred_region
    _
  $region17: #{_lambda_.1} parent=0 // pred_fallthru
    _
  // Predicated region
  $region18: #{_lambda_.1} parent=0 // pred_check
    _
  $region19: #{_lambda_.1} parent=0 // pred_check_branch
    %21 = sbr.rel (0) target = $region21
  $region20: #{_lambda_.1} parent=0 // pred_region
    _
  $region21: #{_lambda_.1} parent=0 // pred_fallthru
    _
  // Predicated region
  $region22: #{_lambda_.1} parent=0 // pred_check
    _
  $region23: #{_lambda_.1} parent=0 // pred_check_branch
    %23 = sbr.rel (0) target = $region25
  $region24: #{_lambda_.1} parent=0 // pred_region
    _
  $region25: #{_lambda_.1} parent=0 // pred_fallthru
    _
  // Predicated region
  $region26: #{_lambda_.1} parent=0 // pred_check
    _
  $region27: #{_lambda_.1} parent=0 // pred_check_branch
    %25 = sbr.rel (0) target = $region29
  $region28: #{_lambda_.1} parent=0 // pred_region
    _
  $region29: #{_lambda_.1} parent=0 // pred_fallthru
    _
  %v27 = vld [vmem:[%s0] sm:$0xf]
  %v28 = vld [vmem:[%s0 + $0x4] sm:$0xf]
  %v29 = vld [vmem:[%s0 + $0xc] sm:$0xf]
  %v30 = vld [vmem:[%s0 + $0x10] sm:$0xf]
  %v31 = vld [vmem:[%s1] sm:$0xf]
  %v32 = vld [vmem:[%s1 + $0x4] sm:$0xf]
  %v33 = vld [vmem:[%s1 + $0x8] sm:$0xf]
  %v34 = vld [vmem:[%s1 + $0xc] sm:$0xf]
  %v35 = vld [vmem:[%s1 + $0x10] sm:$0xf]
  %v36 = vld [vmem:[%s1 + $0x14] sm:$0xf]
  %v37 = vld [vmem:[%s1 + $0x18] sm:$0xf]
  %v38 = vld [vmem:[%s1 + $0x1c] sm:$0xf]
  %v39 = vld [vmem:[%s0 + $0x8] sm:$0x1]
  %v40 = vld [vmem:[%s0 + $0x14] sm:$0x1]
  %vm41 = vsmask.f32 3328
  %vm42 = vsmask.f32 7440
  %vm43 = vmor %vm41, %vm42
  %v45 = vshrl.u32 %v27, 16
  %v47 = vrot.slane %v45, 4
  %v48 = vshll.u32 %v27, 16
  %v50 = vrot.slane %v48, 5
  %v51 = vor.u32 %v47, %v50
  %v52 = vrot.slane %v51, 4
  %v54 = vshll.u32 %v28, 16
  %v56 = vrot.slane %v54, 5
  %v57 = vsel %vm43, %v52, %v56
  %v58 = vshrl.u32 %v28, 16
  %v60 = vrot.slane %v58, 4
  %v61 = vor.u32 %v60, %v56
  %v62 = vrot.slane %v61, 4
  %v64 = vshll.u32 %v39, 16
  %v66 = vrot.slane %v64, 5
  %v67 = vsel %vm43, %v62, %v66
  %v69 = vshrl.u32 %v29, 16
  %v71 = vrot.slane %v69, 4
  %v72 = vshll.u32 %v29, 16
  %v74 = vrot.slane %v72, 5
  %v75 = vor.u32 %v71, %v74
  %v76 = vrot.slane %v75, 4
  %v78 = vshll.u32 %v30, 16
  %v80 = vrot.slane %v78, 5
  %v81 = vsel %vm43, %v76, %v80
  %v82 = vshrl.u32 %v30, 16
  %v84 = vrot.slane %v82, 4
  %v85 = vor.u32 %v84, %v80
  %v86 = vrot.slane %v85, 4
  %v88 = vshll.u32 %v40, 16
  %v90 = vrot.slane %v88, 5
  %v91 = vsel %vm43, %v86, %v90
  %s92 = scalar_lea.vmem %s1, 32
  %v93 = vld [vmem:[%s92] sm:$0xf]
  %v94 = vld [vmem:[%s92 + $0x4] sm:$0xf]
  %v95 = vld [vmem:[%s92 + $0x8] sm:$0xf]
  %v96 = vld [vmem:[%s92 + $0xc] sm:$0xf]
  %v97 = vld [vmem:[%s92 + $0x10] sm:$0xf]
  %v98 = vld [vmem:[%s92 + $0x14] sm:$0xf]
  %v99 = vld [vmem:[%s92 + $0x18] sm:$0xf]
  %v100 = vld [vmem:[%s92 + $0x1c] sm:$0xf]
  %v101 = vunpack.c.l.b16 %v57
  %v102 = vunpack.c.l.b16 %v67
  %v103 = vunpack.c.l.b16 %v81
  %v104 = vunpack.c.l.b16 %v91
  %v105 = vpack.c.b16 %v102, %v101
  %v106 = vpack.c.b16 %v104, %v103
  %v115 = vunpack.c.l.b16 %v93
  %v116 = vunpack.c.l.b16 %v94
  %v117 = vunpack.c.l.b16 %v95
  %v118 = vunpack.c.l.b16 %v96
  %v119 = vunpack.c.l.b16 %v97
  %v120 = vunpack.c.l.b16 %v98
  %v121 = vunpack.c.l.b16 %v99
  %v122 = vunpack.c.l.b16 %v100
  %v123 = vpack.c.b16 %v116, %v115
  %v124 = vpack.c.b16 %v118, %v117
  %v125 = vpack.c.b16 %v120, %v119
  %v126 = vpack.c.b16 %v122, %v121
  %vm131 = vcmask 523264
  %v133 = vsel %vm131, %v105, 0
  %v136 = vsel %vm131, %v106, 0
  %138 = vmatprep.subr.bf16.mxu0 0
  %139 = vmatpush1.bf16.msra.mxu0 0
  %140 = vmatprep.subr.bf16.mxu0 0
  %141 = vmatpush1.bf16.msra.mxu0 0
  %142 = vmatprep.subr.bf16.mxu0 0
  %143 = vmatpush1.bf16.msra.mxu0 0
  %144 = vmatprep.subr.bf16.mxu0 0
  %145 = vmatpush1.bf16.msra.mxu0 0
  %146 = vmatprep.subr.bf16.mxu0 0
  %147 = vmatpush1.bf16.msra.mxu0 %v126
  %148 = vmatprep.subr.bf16.mxu0 0
  %149 = vmatpush1.bf16.msra.mxu0 %v125
  %150 = vmatprep.subr.bf16.mxu0 0
  %151 = vmatpush1.bf16.msra.mxu0 %v124
  %152 = vmatprep.subr.bf16.mxu0 0
  %153 = vmatpush1.bf16.msra.mxu0 %v123
  %154 = vmatprep.subr.bf16.mxu0 0
  %155 = vmatpush2.bf16.msra.mxu0 0
  %156 = vmatprep.subr.bf16.mxu0 0
  %157 = vmatpush2.bf16.msra.mxu0 0
  %158 = vmatprep.subr.bf16.mxu0 0
  %159 = vmatpush2.bf16.msra.mxu0 0
  %160 = vmatprep.subr.bf16.mxu0 0
  %161 = vmatpush2.bf16.msra.mxu0 0
  %162 = vmatprep.subr.bf16.mxu0 0
  %163 = vmatpush2.bf16.msra.mxu0 0
  %164 = vmatprep.subr.bf16.mxu0 0
  %165 = vmatpush2.bf16.msra.mxu0 0
  %166 = vmatprep.subr.bf16.mxu0 0
  %167 = vmatpush2.bf16.msra.mxu0 0
  %168 = vmatprep.subr.bf16.mxu0 0
  %169 = vmatpush2.bf16.msra.mxu0 0
  %170 = vmatprep.mubr.bf16.mxu0 0
  %171 = vmatmul.mubr.bf16.gmra.mxu0 %v133
  %v172 = vpop.f32.mrf.mxu0
  %v173 = vadd.f32 0.0, %v172
  %v174 = vpop.f32.mrf.mxu0
  %v175 = vpop.f32.mrf.mxu0
  %v176 = vadd.f32 0.0, %v175
  %v177 = vpop.f32.mrf.mxu0
  %178 = vmatprep.mubr.bf16.mxu0 0
  %179 = vmatmul.mubr.bf16.gmra.mxu0 %v136
  %v180 = vpop.f32.mrf.mxu0
  %v181 = vadd.f32 0.0, %v180
  %v182 = vpop.f32.mrf.mxu0
  %v183 = vpop.f32.mrf.mxu0
  %v184 = vadd.f32 0.0, %v183
  %v185 = vpop.f32.mrf.mxu0
  %186 = vdwg.mxu0
  %v191 = vunpack.c.l.b16 %v27
  %v192 = vunpack.c.l.b16 %v28
  %v193 = vunpack.c.l.b16 %v29
  %v194 = vunpack.c.l.b16 %v30
  %v195 = vpack.c.b16 %v192, %v191
  %v196 = vpack.c.b16 %v194, %v193
  %v205 = vunpack.c.l.b16 %v31
  %v206 = vunpack.c.l.b16 %v32
  %v207 = vunpack.c.l.b16 %v33
  %v208 = vunpack.c.l.b16 %v34
  %v209 = vunpack.c.l.b16 %v35
  %v210 = vunpack.c.l.b16 %v36
  %v211 = vunpack.c.l.b16 %v37
  %v212 = vunpack.c.l.b16 %v38
  %v213 = vpack.c.b16 %v206, %v205
  %v214 = vpack.c.b16 %v208, %v207
  %v215 = vpack.c.b16 %v210, %v209
  %v216 = vpack.c.b16 %v212, %v211
  %v222 = vsel %vm131, %v195, 0
  %v225 = vsel %vm131, %v196, 0
  %227 = vmatprep.subr.bf16.mxu0 0
  %228 = vmatpush1.bf16.msra.mxu0 0
  %229 = vmatprep.subr.bf16.mxu0 0
  %230 = vmatpush1.bf16.msra.mxu0 0
  %231 = vmatprep.subr.bf16.mxu0 0
  %232 = vmatpush1.bf16.msra.mxu0 0
  %233 = vmatprep.subr.bf16.mxu0 0
  %234 = vmatpush1.bf16.msra.mxu0 0
  %235 = vmatprep.subr.bf16.mxu0 0
  %236 = vmatpush1.bf16.msra.mxu0 %v216
  %237 = vmatprep.subr.bf16.mxu0 0
  %238 = vmatpush1.bf16.msra.mxu0 %v215
  %239 = vmatprep.subr.bf16.mxu0 0
  %240 = vmatpush1.bf16.msra.mxu0 %v214
  %241 = vmatprep.subr.bf16.mxu0 0
  %242 = vmatpush1.bf16.msra.mxu0 %v213
  %243 = vmatprep.subr.bf16.mxu0 0
  %244 = vmatpush2.bf16.msra.mxu0 0
  %245 = vmatprep.subr.bf16.mxu0 0
  %246 = vmatpush2.bf16.msra.mxu0 0
  %247 = vmatprep.subr.bf16.mxu0 0
  %248 = vmatpush2.bf16.msra.mxu0 0
  %249 = vmatprep.subr.bf16.mxu0 0
  %250 = vmatpush2.bf16.msra.mxu0 0
  %251 = vmatprep.subr.bf16.mxu0 0
  %252 = vmatpush2.bf16.msra.mxu0 0
  %253 = vmatprep.subr.bf16.mxu0 0
  %254 = vmatpush2.bf16.msra.mxu0 0
  %255 = vmatprep.subr.bf16.mxu0 0
  %256 = vmatpush2.bf16.msra.mxu0 0
  %257 = vmatprep.subr.bf16.mxu0 0
  %258 = vmatpush2.bf16.msra.mxu0 0
  %259 = vmatprep.mubr.bf16.mxu0 0
  %260 = vmatmul.mubr.bf16.gmra.mxu0 %v222
  %v261 = vpop.f32.mrf.mxu0
  %v262 = vadd.f32 %v173, %v261
  %v263 = vpop.f32.mrf.mxu0
  %v264 = vpop.f32.mrf.mxu0
  %v265 = vadd.f32 %v176, %v264
  %v266 = vpop.f32.mrf.mxu0
  %267 = vmatprep.mubr.bf16.mxu0 0
  %268 = vmatmul.mubr.bf16.gmra.mxu0 %v225
  %v269 = vpop.f32.mrf.mxu0
  %v270 = vadd.f32 %v181, %v269
  %v271 = vpop.f32.mrf.mxu0
  %v272 = vpop.f32.mrf.mxu0
  %v273 = vadd.f32 %v184, %v272
  %v274 = vpop.f32.mrf.mxu0
  %275 = vdwg.mxu0
  %v276 = vld [vmem:[%s0] sm:$0xe]
  %v277 = vld [vmem:[%s0 + $0xc] sm:$0xe]
  %vm282 = vcmask 1042432
  %vm283 = vcmask 1046532
  %vm284 = vmor %vm282, %vm283
  %v285 = vrot.slane %v276, 5
  %v286 = vrot.slane %v285, 4
  %v287 = vrot.slane %v28, 5
  %v288 = vsel %vm284, %v286, %v287
  %v289 = vrot.slane %v287, 4
  %v290 = vrot.slane %v39, 5
  %v291 = vsel %vm284, %v289, %v290
  %v292 = vrot.slane %v277, 5
  %v293 = vrot.slane %v292, 4
  %v294 = vrot.slane %v30, 5
  %v295 = vsel %vm284, %v293, %v294
  %v296 = vrot.slane %v294, 4
  %v297 = vrot.slane %v40, 5
  %v298 = vsel %vm284, %v296, %v297
  %s299 = scalar_lea.vmem %s1, 64
  %v300 = vld [vmem:[%s299] sm:$0xf]
  %v301 = vld [vmem:[%s299 + $0x4] sm:$0xf]
  %v302 = vld [vmem:[%s299 + $0x8] sm:$0xf]
  %v303 = vld [vmem:[%s299 + $0xc] sm:$0xf]
  %v304 = vld [vmem:[%s299 + $0x10] sm:$0xf]
  %v305 = vld [vmem:[%s299 + $0x14] sm:$0xf]
  %v306 = vld [vmem:[%s299 + $0x18] sm:$0xf]
  %v307 = vld [vmem:[%s299 + $0x1c] sm:$0xf]
  %v308 = vunpack.c.l.b16 %v288
  %v309 = vunpack.c.l.b16 %v291
  %v310 = vunpack.c.l.b16 %v295
  %v311 = vunpack.c.l.b16 %v298
  %v312 = vpack.c.b16 %v309, %v308
  %v313 = vpack.c.b16 %v311, %v310
  %v322 = vunpack.c.l.b16 %v300
  %v323 = vunpack.c.l.b16 %v301
  %v324 = vunpack.c.l.b16 %v302
  %v325 = vunpack.c.l.b16 %v303
  %v326 = vunpack.c.l.b16 %v304
  %v327 = vunpack.c.l.b16 %v305
  %v328 = vunpack.c.l.b16 %v306
  %v329 = vunpack.c.l.b16 %v307
  %v330 = vpack.c.b16 %v323, %v322
  %v331 = vpack.c.b16 %v325, %v324
  %v332 = vpack.c.b16 %v327, %v326
  %v333 = vpack.c.b16 %v329, %v328
  %v339 = vsel %vm131, %v312, 0
  %v342 = vsel %vm131, %v313, 0
  %344 = vmatprep.subr.bf16.mxu0 0
  %345 = vmatpush1.bf16.msra.mxu0 0
  %346 = vmatprep.subr.bf16.mxu0 0
  %347 = vmatpush1.bf16.msra.mxu0 0
  %348 = vmatprep.subr.bf16.mxu0 0
  %349 = vmatpush1.bf16.msra.mxu0 0
  %350 = vmatprep.subr.bf16.mxu0 0
  %351 = vmatpush1.bf16.msra.mxu0 0
  %352 = vmatprep.subr.bf16.mxu0 0
  %353 = vmatpush1.bf16.msra.mxu0 %v333
  %354 = vmatprep.subr.bf16.mxu0 0
  %355 = vmatpush1.bf16.msra.mxu0 %v332
  %356 = vmatprep.subr.bf16.mxu0 0
  %357 = vmatpush1.bf16.msra.mxu0 %v331
  %358 = vmatprep.subr.bf16.mxu0 0
  %359 = vmatpush1.bf16.msra.mxu0 %v330
  %360 = vmatprep.subr.bf16.mxu0 0
  %361 = vmatpush2.bf16.msra.mxu0 0
  %362 = vmatprep.subr.bf16.mxu0 0
  %363 = vmatpush2.bf16.msra.mxu0 0
  %364 = vmatprep.subr.bf16.mxu0 0
  %365 = vmatpush2.bf16.msra.mxu0 0
  %366 = vmatprep.subr.bf16.mxu0 0
  %367 = vmatpush2.bf16.msra.mxu0 0
  %368 = vmatprep.subr.bf16.mxu0 0
  %369 = vmatpush2.bf16.msra.mxu0 0
  %370 = vmatprep.subr.bf16.mxu0 0
  %371 = vmatpush2.bf16.msra.mxu0 0
  %372 = vmatprep.subr.bf16.mxu0 0
  %373 = vmatpush2.bf16.msra.mxu0 0
  %374 = vmatprep.subr.bf16.mxu0 0
  %375 = vmatpush2.bf16.msra.mxu0 0
  %376 = vmatprep.mubr.bf16.mxu0 0
  %377 = vmatmul.mubr.bf16.gmra.mxu0 %v339
  %v378 = vpop.f32.mrf.mxu0
  %v379 = vadd.f32 0.0, %v378
  %v380 = vpop.f32.mrf.mxu0
  %v381 = vpop.f32.mrf.mxu0
  %v382 = vadd.f32 0.0, %v381
  %v383 = vpop.f32.mrf.mxu0
  %384 = vmatprep.mubr.bf16.mxu0 0
  %385 = vmatmul.mubr.bf16.gmra.mxu0 %v342
  %v386 = vpop.f32.mrf.mxu0
  %v387 = vadd.f32 0.0, %v386
  %v388 = vpop.f32.mrf.mxu0
  %v389 = vpop.f32.mrf.mxu0
  %v390 = vadd.f32 0.0, %v389
  %v391 = vpop.f32.mrf.mxu0
  %392 = vdwg.mxu0
  %v393 = vadd.f32 %v262, %v379
  %v394 = vadd.f32 %v265, %v382
  %v395 = vadd.f32 %v270, %v387
  %v396 = vadd.f32 %v273, %v390
  %v397 = vld [vmem:[%s2] sm:$0x1]
  %v399 = vlaneseq
  %v400 = vshrl.u32 %v399, 7
  %v401 = vsub.s32 0, %v400
  %v402 = vrot.slane %v397, %v401
  %v404 = vadd.f32 %v393, %v402
  %v405 = vadd.f32 %v394, %v402
  %v406 = vadd.f32 %v395, %v402
  %v407 = vadd.f32 %v396, %v402
  %v408 = vmax.f32 %v404, 0.0
  %v409 = vmax.f32 %v405, 0.0
  %v410 = vmax.f32 %v406, 0.0
  %v411 = vmax.f32 %v407, 0.0
  %412 = vst [vmem:[#allocation2] sm:$0xf] 0
  %413 = vst [vmem:[#allocation2 + $0x4] sm:$0xf] 0
  %414 = vst [vmem:[#allocation2 + $0x18] sm:$0xf] 0
  %415 = vst [vmem:[#allocation2 + $0x1c] sm:$0xf] 0
  %416 = vst [vmem:[#allocation2 + $0x10] sm:$0xf] 0
  %417 = vst [vmem:[#allocation2 + $0x14] sm:$0xf] 0
  %418 = vst [vmem:[#allocation2 + $0x28] sm:$0xf] 0
  %419 = vst [vmem:[#allocation2 + $0x2c] sm:$0xf] 0
  %v420 = vpack.c.bf16 %v409, %v408
  %v421 = vpack.c.bf16 %v411, %v410
  %v424 = vunpack.c.l.b16 %v420
  %v425 = vunpack.c.h.b16 %v420
  %v426 = vunpack.c.l.b16 %v421
  %v427 = vunpack.c.h.b16 %v421
  %v428 = vpack.c.b16 %v424, %v424
  %v429 = vpack.c.b16 %v425, %v425
  %v430 = vpack.c.b16 %v426, %v426
  %v431 = vpack.c.b16 %v427, %v427
  %436 = vst [vmem:[#allocation2 + $0x8] sm:$0xf] %v428
  %437 = vst [vmem:[#allocation2 + $0xc] sm:$0xf] %v429
  %438 = vst [vmem:[#allocation2 + $0x20] sm:$0xf] %v430
  %439 = vst [vmem:[#allocation2 + $0x24] sm:$0xf] %v431
  %v440 = vld [vmem:[#allocation2 + $0x4] sm:$0x8]
  %v441 = vld [vmem:[#allocation2 + $0x8] sm:$0xf]
  %v442 = vld [vmem:[#allocation2 + $0xc] sm:$0xf]
  %v443 = vld [vmem:[#allocation2 + $0x1c] sm:$0x8]
  %v444 = vld [vmem:[#allocation2 + $0x20] sm:$0xf]
  %v445 = vld [vmem:[#allocation2 + $0x24] sm:$0xf]
  %vm446 = vsmask.f32 256
  %vm447 = vsmask.f32 4368
  %vm448 = vmor %vm446, %vm447
  %v450 = vshrl.u32 %v440, 16
  %v452 = vrot.slane %v450, 7
  %v453 = vrot.slane %v452, 4
  %v455 = vshrl.u32 %v441, 16
  %v457 = vrot.slane %v455, 7
  %v458 = vshll.u32 %v441, 16
  %v460 = vor.u32 %v457, %v458
  %v461 = vsel %vm448, %v453, %v460
  %v462 = vrot.slane %v457, 4
  %v464 = vshrl.u32 %v442, 16
  %v466 = vrot.slane %v464, 7
  %v467 = vshll.u32 %v442, 16
  %v469 = vor.u32 %v466, %v467
  %v470 = vsel %vm448, %v462, %v469
  %v472 = vshrl.u32 %v443, 16
  %v474 = vrot.slane %v472, 7
  %v475 = vrot.slane %v474, 4
  %v477 = vshrl.u32 %v444, 16
  %v479 = vrot.slane %v477, 7
  %v480 = vshll.u32 %v444, 16
  %v482 = vor.u32 %v479, %v480
  %v483 = vsel %vm448, %v475, %v482
  %v484 = vrot.slane %v479, 4
  %v486 = vshrl.u32 %v445, 16
  %v488 = vrot.slane %v486, 7
  %v489 = vshll.u32 %v445, 16
  %v491 = vor.u32 %v488, %v489
  %v492 = vsel %vm448, %v484, %v491
  %v493 = vld [vmem:[%s3] sm:$0xf]
  %v494 = vld [vmem:[%s3 + $0x4] sm:$0xf]
  %v495 = vld [vmem:[%s3 + $0x8] sm:$0xf]
  %v496 = vld [vmem:[%s3 + $0xc] sm:$0xf]
  %v497 = vld [vmem:[%s3 + $0x10] sm:$0xf]
  %v498 = vld [vmem:[%s3 + $0x14] sm:$0xf]
  %v499 = vld [vmem:[%s3 + $0x18] sm:$0xf]
  %v500 = vld [vmem:[%s3 + $0x1c] sm:$0xf]
  %v501 = vld [vmem:[%s3 + $0x20] sm:$0xf]
  %v502 = vld [vmem:[%s3 + $0x24] sm:$0xf]
  %v503 = vld [vmem:[%s3 + $0x28] sm:$0xf]
  %v504 = vld [vmem:[%s3 + $0x2c] sm:$0xf]
  %v505 = vld [vmem:[%s3 + $0x30] sm:$0xf]
  %v506 = vld [vmem:[%s3 + $0x34] sm:$0xf]
  %v507 = vld [vmem:[%s3 + $0x38] sm:$0xf]
  %v508 = vld [vmem:[%s3 + $0x3c] sm:$0xf]
  %s509 = scalar_lea.vmem %s3, 64
  %v510 = vld [vmem:[%s509] sm:$0xf]
  %v511 = vld [vmem:[%s509 + $0x4] sm:$0xf]
  %v512 = vld [vmem:[%s509 + $0x8] sm:$0xf]
  %v513 = vld [vmem:[%s509 + $0xc] sm:$0xf]
  %v514 = vld [vmem:[%s509 + $0x10] sm:$0xf]
  %v515 = vld [vmem:[%s509 + $0x14] sm:$0xf]
  %v516 = vld [vmem:[%s509 + $0x18] sm:$0xf]
  %v517 = vld [vmem:[%s509 + $0x1c] sm:$0xf]
  %v518 = vld [vmem:[%s509 + $0x20] sm:$0xf]
  %v519 = vld [vmem:[%s509 + $0x24] sm:$0xf]
  %v520 = vld [vmem:[%s509 + $0x28] sm:$0xf]
  %v521 = vld [vmem:[%s509 + $0x2c] sm:$0xf]
  %v522 = vld [vmem:[%s509 + $0x30] sm:$0xf]
  %v523 = vld [vmem:[%s509 + $0x34] sm:$0xf]
  %v524 = vld [vmem:[%s509 + $0x38] sm:$0xf]
  %v525 = vld [vmem:[%s509 + $0x3c] sm:$0xf]
  %v530 = vunpack.c.l.b16 %v441
  %v531 = vunpack.c.l.b16 %v442
  %v532 = vunpack.c.l.b16 %v444
  %v533 = vunpack.c.l.b16 %v445
  %v534 = vpack.c.b16 %v531, %v530
  %v535 = vpack.c.b16 %v533, %v532
  %v554 = vunpack.c.l.b16 %v510
  %v555 = vunpack.c.l.b16 %v511
  %v556 = vunpack.c.l.b16 %v512
  %v557 = vunpack.c.l.b16 %v513
  %v558 = vunpack.c.l.b16 %v514
  %v559 = vunpack.c.l.b16 %v515
  %v560 = vunpack.c.l.b16 %v516
  %v561 = vunpack.c.l.b16 %v517
  %v562 = vunpack.c.l.b16 %v518
  %v563 = vunpack.c.l.b16 %v519
  %v564 = vunpack.c.l.b16 %v520
  %v565 = vunpack.c.l.b16 %v521
  %v566 = vunpack.c.l.b16 %v522
  %v567 = vunpack.c.l.b16 %v523
  %v568 = vunpack.c.l.b16 %v524
  %v569 = vunpack.c.l.b16 %v525
  %v570 = vpack.c.b16 %v555, %v554
  %v571 = vpack.c.b16 %v557, %v556
  %v572 = vpack.c.b16 %v559, %v558
  %v573 = vpack.c.b16 %v561, %v560
  %v574 = vpack.c.b16 %v563, %v562
  %v575 = vpack.c.b16 %v565, %v564
  %v576 = vpack.c.b16 %v567, %v566
  %v577 = vpack.c.b16 %v569, %v568
  %586 = vmatprep.subr.bf16.mxu0 0
  %587 = vmatpush1.bf16.msra.mxu0 %v577
  %588 = vmatprep.subr.bf16.mxu0 0
  %589 = vmatpush1.bf16.msra.mxu0 %v576
  %590 = vmatprep.subr.bf16.mxu0 0
  %591 = vmatpush1.bf16.msra.mxu0 %v575
  %592 = vmatprep.subr.bf16.mxu0 0
  %593 = vmatpush1.bf16.msra.mxu0 %v574
  %594 = vmatprep.subr.bf16.mxu0 0
  %595 = vmatpush1.bf16.msra.mxu0 %v573
  %596 = vmatprep.subr.bf16.mxu0 0
  %597 = vmatpush1.bf16.msra.mxu0 %v572
  %598 = vmatprep.subr.bf16.mxu0 0
  %599 = vmatpush1.bf16.msra.mxu0 %v571
  %600 = vmatprep.subr.bf16.mxu0 0
  %601 = vmatpush1.bf16.msra.mxu0 %v570
  %602 = vmatprep.subr.bf16.mxu0 0
  %603 = vmatpush2.bf16.msra.mxu0 0
  %604 = vmatprep.subr.bf16.mxu0 0
  %605 = vmatpush2.bf16.msra.mxu0 0
  %606 = vmatprep.subr.bf16.mxu0 0
  %607 = vmatpush2.bf16.msra.mxu0 0
  %608 = vmatprep.subr.bf16.mxu0 0
  %609 = vmatpush2.bf16.msra.mxu0 0
  %610 = vmatprep.subr.bf16.mxu0 0
  %611 = vmatpush2.bf16.msra.mxu0 0
  %612 = vmatprep.subr.bf16.mxu0 0
  %613 = vmatpush2.bf16.msra.mxu0 0
  %614 = vmatprep.subr.bf16.mxu0 0
  %615 = vmatpush2.bf16.msra.mxu0 0
  %616 = vmatprep.subr.bf16.mxu0 0
  %617 = vmatpush2.bf16.msra.mxu0 0
  %618 = vmatprep.mubr.bf16.mxu0 0
  %619 = vmatmul.mubr.bf16.gmra.mxu0 %v534
  %v620 = vpop.f32.mrf.mxu0
  %v621 = vadd.f32 0.0, %v620
  %v622 = vpop.f32.mrf.mxu0
  %v623 = vpop.f32.mrf.mxu0
  %v624 = vadd.f32 0.0, %v623
  %v625 = vpop.f32.mrf.mxu0
  %626 = vmatprep.mubr.bf16.mxu0 0
  %627 = vmatmul.mubr.bf16.gmra.mxu0 %v535
  %v628 = vpop.f32.mrf.mxu0
  %v629 = vadd.f32 0.0, %v628
  %v630 = vpop.f32.mrf.mxu0
  %v631 = vpop.f32.mrf.mxu0
  %v632 = vadd.f32 0.0, %v631
  %v633 = vpop.f32.mrf.mxu0
  %634 = vdwg.mxu0
  %v635 = vunpack.c.l.b16 %v461
  %v636 = vunpack.c.l.b16 %v470
  %v637 = vunpack.c.l.b16 %v483
  %v638 = vunpack.c.l.b16 %v492
  %v639 = vpack.c.b16 %v636, %v635
  %v640 = vpack.c.b16 %v638, %v637
  %v659 = vunpack.c.l.b16 %v493
  %v660 = vunpack.c.l.b16 %v494
  %v661 = vunpack.c.l.b16 %v495
  %v662 = vunpack.c.l.b16 %v496
  %v663 = vunpack.c.l.b16 %v497
  %v664 = vunpack.c.l.b16 %v498
  %v665 = vunpack.c.l.b16 %v499
  %v666 = vunpack.c.l.b16 %v500
  %v667 = vunpack.c.l.b16 %v501
  %v668 = vunpack.c.l.b16 %v502
  %v669 = vunpack.c.l.b16 %v503
  %v670 = vunpack.c.l.b16 %v504
  %v671 = vunpack.c.l.b16 %v505
  %v672 = vunpack.c.l.b16 %v506
  %v673 = vunpack.c.l.b16 %v507
  %v674 = vunpack.c.l.b16 %v508
  %v675 = vpack.c.b16 %v660, %v659
  %v676 = vpack.c.b16 %v662, %v661
  %v677 = vpack.c.b16 %v664, %v663
  %v678 = vpack.c.b16 %v666, %v665
  %v679 = vpack.c.b16 %v668, %v667
  %v680 = vpack.c.b16 %v670, %v669
  %v681 = vpack.c.b16 %v672, %v671
  %v682 = vpack.c.b16 %v674, %v673
  %691 = vmatprep.subr.bf16.mxu0 0
  %692 = vmatpush1.bf16.msra.mxu0 %v682
  %693 = vmatprep.subr.bf16.mxu0 0
  %694 = vmatpush1.bf16.msra.mxu0 %v681
  %695 = vmatprep.subr.bf16.mxu0 0
  %696 = vmatpush1.bf16.msra.mxu0 %v680
  %697 = vmatprep.subr.bf16.mxu0 0
  %698 = vmatpush1.bf16.msra.mxu0 %v679
  %699 = vmatprep.subr.bf16.mxu0 0
  %700 = vmatpush1.bf16.msra.mxu0 %v678
  %701 = vmatprep.subr.bf16.mxu0 0
  %702 = vmatpush1.bf16.msra.mxu0 %v677
  %703 = vmatprep.subr.bf16.mxu0 0
  %704 = vmatpush1.bf16.msra.mxu0 %v676
  %705 = vmatprep.subr.bf16.mxu0 0
  %706 = vmatpush1.bf16.msra.mxu0 %v675
  %707 = vmatprep.subr.bf16.mxu0 0
  %708 = vmatpush2.bf16.msra.mxu0 0
  %709 = vmatprep.subr.bf16.mxu0 0
  %710 = vmatpush2.bf16.msra.mxu0 0
  %711 = vmatprep.subr.bf16.mxu0 0
  %712 = vmatpush2.bf16.msra.mxu0 0
  %713 = vmatprep.subr.bf16.mxu0 0
  %714 = vmatpush2.bf16.msra.mxu0 0
  %715 = vmatprep.subr.bf16.mxu0 0
  %716 = vmatpush2.bf16.msra.mxu0 0
  %717 = vmatprep.subr.bf16.mxu0 0
  %718 = vmatpush2.bf16.msra.mxu0 0
  %719 = vmatprep.subr.bf16.mxu0 0
  %720 = vmatpush2.bf16.msra.mxu0 0
  %721 = vmatprep.subr.bf16.mxu0 0
  %722 = vmatpush2.bf16.msra.mxu0 0
  %723 = vmatprep.mubr.bf16.mxu0 0
  %724 = vmatmul.mubr.bf16.gmra.mxu0 %v639
  %v725 = vpop.f32.mrf.mxu0
  %v726 = vadd.f32 %v621, %v725
  %v727 = vpop.f32.mrf.mxu0
  %v728 = vpop.f32.mrf.mxu0
  %v729 = vadd.f32 %v624, %v728
  %v730 = vpop.f32.mrf.mxu0
  %731 = vmatprep.mubr.bf16.mxu0 0
  %732 = vmatmul.mubr.bf16.gmra.mxu0 %v640
  %v733 = vpop.f32.mrf.mxu0
  %v734 = vadd.f32 %v629, %v733
  %v735 = vpop.f32.mrf.mxu0
  %v736 = vpop.f32.mrf.mxu0
  %v737 = vadd.f32 %v632, %v736
  %v738 = vpop.f32.mrf.mxu0
  %739 = vdwg.mxu0
  %v740 = vld [vmem:[#allocation2 + $0x8] sm:$0xf]
  %v741 = vld [vmem:[#allocation2 + $0xc] sm:$0xf]
  %v742 = vld [vmem:[#allocation2 + $0x10] sm:$0x1]
  %v743 = vld [vmem:[#allocation2 + $0x20] sm:$0xf]
  %v744 = vld [vmem:[#allocation2 + $0x24] sm:$0xf]
  %v745 = vld [vmem:[#allocation2 + $0x28] sm:$0x1]
  %v747 = vshrl.u32 %v740, 16
  %v749 = vrot.slane %v747, 4
  %v750 = vshll.u32 %v740, 16
  %v752 = vrot.slane %v750, 5
  %v753 = vor.u32 %v749, %v752
  %v754 = vrot.slane %v753, 4
  %v756 = vshll.u32 %v741, 16
  %v758 = vrot.slane %v756, 5
  %v759 = vsel %vm43, %v754, %v758
  %v760 = vshrl.u32 %v741, 16
  %v762 = vrot.slane %v760, 4
  %v763 = vor.u32 %v762, %v758
  %v764 = vrot.slane %v763, 4
  %v766 = vshll.u32 %v742, 16
  %v768 = vrot.slane %v766, 5
  %v769 = vsel %vm43, %v764, %v768
  %v771 = vshrl.u32 %v743, 16
  %v773 = vrot.slane %v771, 4
  %v774 = vshll.u32 %v743, 16
  %v776 = vrot.slane %v774, 5
  %v777 = vor.u32 %v773, %v776
  %v778 = vrot.slane %v777, 4
  %v780 = vshll.u32 %v744, 16
  %v782 = vrot.slane %v780, 5
  %v783 = vsel %vm43, %v778, %v782
  %v784 = vshrl.u32 %v744, 16
  %v786 = vrot.slane %v784, 4
  %v787 = vor.u32 %v786, %v782
  %v788 = vrot.slane %v787, 4
  %v790 = vshll.u32 %v745, 16
  %v792 = vrot.slane %v790, 5
  %v793 = vsel %vm43, %v788, %v792
  %s794 = scalar_lea.vmem %s3, 128
  %v795 = vld [vmem:[%s794] sm:$0xf]
  %v796 = vld [vmem:[%s794 + $0x4] sm:$0xf]
  %v797 = vld [vmem:[%s794 + $0x8] sm:$0xf]
  %v798 = vld [vmem:[%s794 + $0xc] sm:$0xf]
  %v799 = vld [vmem:[%s794 + $0x10] sm:$0xf]
  %v800 = vld [vmem:[%s794 + $0x14] sm:$0xf]
  %v801 = vld [vmem:[%s794 + $0x18] sm:$0xf]
  %v802 = vld [vmem:[%s794 + $0x1c] sm:$0xf]
  %v803 = vld [vmem:[%s794 + $0x20] sm:$0xf]
  %v804 = vld [vmem:[%s794 + $0x24] sm:$0xf]
  %v805 = vld [vmem:[%s794 + $0x28] sm:$0xf]
  %v806 = vld [vmem:[%s794 + $0x2c] sm:$0xf]
  %v807 = vld [vmem:[%s794 + $0x30] sm:$0xf]
  %v808 = vld [vmem:[%s794 + $0x34] sm:$0xf]
  %v809 = vld [vmem:[%s794 + $0x38] sm:$0xf]
  %v810 = vld [vmem:[%s794 + $0x3c] sm:$0xf]
  %v811 = vunpack.c.l.b16 %v759
  %v812 = vunpack.c.l.b16 %v769
  %v813 = vunpack.c.l.b16 %v783
  %v814 = vunpack.c.l.b16 %v793
  %v815 = vpack.c.b16 %v812, %v811
  %v816 = vpack.c.b16 %v814, %v813
  %v835 = vunpack.c.l.b16 %v795
  %v836 = vunpack.c.l.b16 %v796
  %v837 = vunpack.c.l.b16 %v797
  %v838 = vunpack.c.l.b16 %v798
  %v839 = vunpack.c.l.b16 %v799
  %v840 = vunpack.c.l.b16 %v800
  %v841 = vunpack.c.l.b16 %v801
  %v842 = vunpack.c.l.b16 %v802
  %v843 = vunpack.c.l.b16 %v803
  %v844 = vunpack.c.l.b16 %v804
  %v845 = vunpack.c.l.b16 %v805
  %v846 = vunpack.c.l.b16 %v806
  %v847 = vunpack.c.l.b16 %v807
  %v848 = vunpack.c.l.b16 %v808
  %v849 = vunpack.c.l.b16 %v809
  %v850 = vunpack.c.l.b16 %v810
  %v851 = vpack.c.b16 %v836, %v835
  %v852 = vpack.c.b16 %v838, %v837
  %v853 = vpack.c.b16 %v840, %v839
  %v854 = vpack.c.b16 %v842, %v841
  %v855 = vpack.c.b16 %v844, %v843
  %v856 = vpack.c.b16 %v846, %v845
  %v857 = vpack.c.b16 %v848, %v847
  %v858 = vpack.c.b16 %v850, %v849
  %867 = vmatprep.subr.bf16.mxu0 0
  %868 = vmatpush1.bf16.msra.mxu0 %v858
  %869 = vmatprep.subr.bf16.mxu0 0
  %870 = vmatpush1.bf16.msra.mxu0 %v857
  %871 = vmatprep.subr.bf16.mxu0 0
  %872 = vmatpush1.bf16.msra.mxu0 %v856
  %873 = vmatprep.subr.bf16.mxu0 0
  %874 = vmatpush1.bf16.msra.mxu0 %v855
  %875 = vmatprep.subr.bf16.mxu0 0
  %876 = vmatpush1.bf16.msra.mxu0 %v854
  %877 = vmatprep.subr.bf16.mxu0 0
  %878 = vmatpush1.bf16.msra.mxu0 %v853
  %879 = vmatprep.subr.bf16.mxu0 0
  %880 = vmatpush1.bf16.msra.mxu0 %v852
  %881 = vmatprep.subr.bf16.mxu0 0
  %882 = vmatpush1.bf16.msra.mxu0 %v851
  %883 = vmatprep.subr.bf16.mxu0 0
  %884 = vmatpush2.bf16.msra.mxu0 0
  %885 = vmatprep.subr.bf16.mxu0 0
  %886 = vmatpush2.bf16.msra.mxu0 0
  %887 = vmatprep.subr.bf16.mxu0 0
  %888 = vmatpush2.bf16.msra.mxu0 0
  %889 = vmatprep.subr.bf16.mxu0 0
  %890 = vmatpush2.bf16.msra.mxu0 0
  %891 = vmatprep.subr.bf16.mxu0 0
  %892 = vmatpush2.bf16.msra.mxu0 0
  %893 = vmatprep.subr.bf16.mxu0 0
  %894 = vmatpush2.bf16.msra.mxu0 0
  %895 = vmatprep.subr.bf16.mxu0 0
  %896 = vmatpush2.bf16.msra.mxu0 0
  %897 = vmatprep.subr.bf16.mxu0 0
  %898 = vmatpush2.bf16.msra.mxu0 0
  %899 = vmatprep.mubr.bf16.mxu0 0
  %900 = vmatmul.mubr.bf16.gmra.mxu0 %v815
  %v901 = vpop.f32.mrf.mxu0
  %v902 = vadd.f32 0.0, %v901
  %v903 = vpop.f32.mrf.mxu0
  %v904 = vpop.f32.mrf.mxu0
  %v905 = vadd.f32 0.0, %v904
  %v906 = vpop.f32.mrf.mxu0
  %907 = vmatprep.mubr.bf16.mxu0 0
  %908 = vmatmul.mubr.bf16.gmra.mxu0 %v816
  %v909 = vpop.f32.mrf.mxu0
  %v910 = vadd.f32 0.0, %v909
  %v911 = vpop.f32.mrf.mxu0
  %v912 = vpop.f32.mrf.mxu0
  %v913 = vadd.f32 0.0, %v912
  %v914 = vpop.f32.mrf.mxu0
  %915 = vdwg.mxu0
  %v916 = vadd.f32 %v726, %v902
  %v917 = vadd.f32 %v729, %v905
  %v918 = vadd.f32 %v734, %v910
  %v919 = vadd.f32 %v737, %v913
  %v920 = vld [vmem:[%s4] sm:$0x1]
  %v922 = vlaneseq
  %v923 = vshrl.u32 %v922, 7
  %v924 = vsub.s32 0, %v923
  %v925 = vrot.slane %v920, %v924
  %v927 = vadd.f32 %v916, %v925
  %v928 = vadd.f32 %v917, %v925
  %v929 = vadd.f32 %v918, %v925
  %v930 = vadd.f32 %v919, %v925
  %v931 = vmax.f32 %v927, 0.0
  %v932 = vmax.f32 %v928, 0.0
  %v933 = vmax.f32 %v929, 0.0
  %v934 = vmax.f32 %v930, 0.0
  %v935 = vld [vmem:[%s0] sm:$0xf]
  %v936 = vld [vmem:[%s0 + $0x4] sm:$0xf]
  %v937 = vld [vmem:[%s0 + $0x8] sm:$0x1]
  %v938 = vld [vmem:[%s0 + $0xc] sm:$0xf]
  %v939 = vld [vmem:[%s0 + $0x10] sm:$0xf]
  %v940 = vld [vmem:[%s0 + $0x14] sm:$0x1]
  %v942 = vshrl.u32 %v935, 16
  %v944 = vrot.slane %v942, 4
  %v945 = vshll.u32 %v935, 16
  %v947 = vrot.slane %v945, 5
  %v948 = vor.u32 %v944, %v947
  %v949 = vrot.slane %v948, 4
  %v951 = vshll.u32 %v936, 16
  %v953 = vrot.slane %v951, 5
  %v954 = vsel %vm43, %v949, %v953
  %v955 = vshrl.u32 %v936, 16
  %v957 = vrot.slane %v955, 4
  %v958 = vor.u32 %v957, %v953
  %v959 = vrot.slane %v958, 4
  %v961 = vshll.u32 %v937, 16
  %v963 = vrot.slane %v961, 5
  %v964 = vsel %vm43, %v959, %v963
  %v966 = vshrl.u32 %v938, 16
  %v968 = vrot.slane %v966, 4
  %v969 = vshll.u32 %v938, 16
  %v971 = vrot.slane %v969, 5
  %v972 = vor.u32 %v968, %v971
  %v973 = vrot.slane %v972, 4
  %v975 = vshll.u32 %v939, 16
  %v977 = vrot.slane %v975, 5
  %v978 = vsel %vm43, %v973, %v977
  %v979 = vshrl.u32 %v939, 16
  %v981 = vrot.slane %v979, 4
  %v982 = vor.u32 %v981, %v977
  %v983 = vrot.slane %v982, 4
  %v985 = vshll.u32 %v940, 16
  %v987 = vrot.slane %v985, 5
  %v988 = vsel %vm43, %v983, %v987
  %v989 = vld [vmem:[%s5] sm:$0xf]
  %v990 = vld [vmem:[%s5 + $0x4] sm:$0xf]
  %v991 = vld [vmem:[%s5 + $0x8] sm:$0xf]
  %v992 = vld [vmem:[%s5 + $0xc] sm:$0xf]
  %v993 = vld [vmem:[%s5 + $0x10] sm:$0xf]
  %v994 = vld [vmem:[%s5 + $0x14] sm:$0xf]
  %v995 = vld [vmem:[%s5 + $0x18] sm:$0xf]
  %v996 = vld [vmem:[%s5 + $0x1c] sm:$0xf]
  %v997 = vld [vmem:[%s6] sm:$0x1]
  %v999 = vlaneseq
  %v1000 = vshrl.u32 %v999, 7
  %v1001 = vsub.s32 0, %v1000
  %v1002 = vrot.slane %v997, %v1001
  %v1004 = vunpack.c.l.b16 %v954
  %v1005 = vunpack.c.l.b16 %v964
  %v1006 = vunpack.c.l.b16 %v978
  %v1007 = vunpack.c.l.b16 %v988
  %v1008 = vpack.c.b16 %v1005, %v1004
  %v1009 = vpack.c.b16 %v1007, %v1006
  %v1018 = vunpack.c.l.b16 %v989
  %v1019 = vunpack.c.l.b16 %v990
  %v1020 = vunpack.c.l.b16 %v991
  %v1021 = vunpack.c.l.b16 %v992
  %v1022 = vunpack.c.l.b16 %v993
  %v1023 = vunpack.c.l.b16 %v994
  %v1024 = vunpack.c.l.b16 %v995
  %v1025 = vunpack.c.l.b16 %v996
  %v1026 = vpack.c.b16 %v1019, %v1018
  %v1027 = vpack.c.b16 %v1021, %v1020
  %v1028 = vpack.c.b16 %v1023, %v1022
  %v1029 = vpack.c.b16 %v1025, %v1024
  %v1035 = vsel %vm131, %v1008, 0
  %v1038 = vsel %vm131, %v1009, 0
  %1040 = vmatprep.subr.bf16.mxu0 0
  %1041 = vmatpush1.bf16.msra.mxu0 0
  %1042 = vmatprep.subr.bf16.mxu0 0
  %1043 = vmatpush1.bf16.msra.mxu0 0
  %1044 = vmatprep.subr.bf16.mxu0 0
  %1045 = vmatpush1.bf16.msra.mxu0 0
  %1046 = vmatprep.subr.bf16.mxu0 0
  %1047 = vmatpush1.bf16.msra.mxu0 0
  %1048 = vmatprep.subr.bf16.mxu0 0
  %1049 = vmatpush1.bf16.msra.mxu0 %v1029
  %1050 = vmatprep.subr.bf16.mxu0 0
  %1051 = vmatpush1.bf16.msra.mxu0 %v1028
  %1052 = vmatprep.subr.bf16.mxu0 0
  %1053 = vmatpush1.bf16.msra.mxu0 %v1027
  %1054 = vmatprep.subr.bf16.mxu0 0
  %1055 = vmatpush1.bf16.msra.mxu0 %v1026
  %1056 = vmatprep.subr.bf16.mxu0 0
  %1057 = vmatpush2.bf16.msra.mxu0 0
  %1058 = vmatprep.subr.bf16.mxu0 0
  %1059 = vmatpush2.bf16.msra.mxu0 0
  %1060 = vmatprep.subr.bf16.mxu0 0
  %1061 = vmatpush2.bf16.msra.mxu0 0
  %1062 = vmatprep.subr.bf16.mxu0 0
  %1063 = vmatpush2.bf16.msra.mxu0 0
  %1064 = vmatprep.subr.bf16.mxu0 0
  %1065 = vmatpush2.bf16.msra.mxu0 0
  %1066 = vmatprep.subr.bf16.mxu0 0
  %1067 = vmatpush2.bf16.msra.mxu0 0
  %1068 = vmatprep.subr.bf16.mxu0 0
  %1069 = vmatpush2.bf16.msra.mxu0 0
  %1070 = vmatprep.subr.bf16.mxu0 0
  %1071 = vmatpush2.bf16.msra.mxu0 0
  %1072 = vmatprep.mubr.bf16.mxu0 0
  %1073 = vmatmul.mubr.bf16.gmra.mxu0 %v1035
  %v1074 = vpop.f32.mrf.mxu0
  %v1075 = vadd.f32 %v1002, %v1074
  %v1076 = vpop.f32.mrf.mxu0
  %v1077 = vpop.f32.mrf.mxu0
  %v1078 = vadd.f32 %v1002, %v1077
  %v1079 = vpop.f32.mrf.mxu0
  %1080 = vmatprep.mubr.bf16.mxu0 0
  %1081 = vmatmul.mubr.bf16.gmra.mxu0 %v1038
  %v1082 = vpop.f32.mrf.mxu0
  %v1083 = vadd.f32 %v1002, %v1082
  %v1084 = vpop.f32.mrf.mxu0
  %v1085 = vpop.f32.mrf.mxu0
  %v1086 = vadd.f32 %v1002, %v1085
  %v1087 = vpop.f32.mrf.mxu0
  %1088 = vdwg.mxu0
  %v1089 = vmax.f32 %v1075, 0.0
  %v1090 = vmax.f32 %v1078, 0.0
  %v1091 = vmax.f32 %v1083, 0.0
  %v1092 = vmax.f32 %v1086, 0.0
  %v1093 = vadd.f32 %v931, %v1089
  %v1094 = vadd.f32 %v932, %v1090
  %v1095 = vadd.f32 %v933, %v1091
  %v1096 = vadd.f32 %v934, %v1092
  %v1097 = vmax.f32 %v1093, 0.0
  %v1098 = vmax.f32 %v1094, 0.0
  %v1099 = vmax.f32 %v1095, 0.0
  %v1100 = vmax.f32 %v1096, 0.0
  %1101 = vst [vmem:[%s7] sm:$0xff] %v1097
  %1102 = vst [vmem:[%s7 + $0x8] sm:$0xff] %v1098
  %1103 = vst [vmem:[%s7 + $0x10] sm:$0xff] %v1099
  %1104 = vst [vmem:[%s7 + $0x18] sm:$0xff] %v1100
  // Predicated region
  $region30: #{_lambda_.1} parent=0 // pred_check
    _
  $region31: #{_lambda_.1} parent=0 // pred_check_branch
    %1106 = sbr.rel (0) target = $region33
  $region32: #{_lambda_.1} parent=0 // pred_region
    _
  $region33: #{_lambda_.1} parent=0 // pred_fallthru
    _
  // Predicated region
  $region34: #{_lambda_.1} parent=0 // pred_check
    _
  $region35: #{_lambda_.1} parent=0 // pred_check_branch
    %1108 = sbr.rel (0) target = $region37
  $region36: #{_lambda_.1} parent=0 // pred_region
    _
  $region37: #{_lambda_.1} parent=0 // pred_fallthru
    _

</llo_original>
